<compile_context>
chip_gen: v7x
topology: tpu7x:2x2x1
jax: 0.10.0
libtpu: 0.0.40
codegen_flags: <defaults>
</compile_context>

<pallas_src>
import functools

import jax
import jax.numpy as jnp
from jax.experimental import pallas as pl
from jax.experimental.pallas import tpu as pltpu


def _interp_kernel(anchor_ref, feat_ref, out_ref, w_ref, *, side, store_nc,
                   compute_bf16):
    """One (batch, core-split, channel-tile) grid step.

    anchor_ref: (1, N, 2) if store_nc else (1, 2, N)   float32, normalized [0, 1]
    feat_ref:   (1, c_tile, H*W)
    out_ref:    (1, N, c_tile) if store_nc else (1, c_tile, N)
    w_ref:      persistent VMEM scratch with bilinear weights, (N, H*W) or (H*W, N)
    """
    j = pl.program_id(2)
    HW = side * side
    fmax = float(side - 1)

    # Rebuild the bilinear weight matrix at the start of every channel sweep
    # (j == 0).  The channel axis is innermost / "arbitrary", so W persists across it.
    @pl.when(j == 0)
    def _build_weights():
        if store_nc:
            xy = anchor_ref[0]                                        # (N, 2)
            n = xy.shape[0]
            x = jnp.clip(xy[:, 0:1] * fmax, 0.0, fmax)                # (N, 1)
            y = jnp.clip(xy[:, 1:2] * fmax, 0.0, fmax)                # (N, 1)
            r = jax.lax.broadcasted_iota(jnp.int32, (n, HW), 1).astype(jnp.float32)
        else:
            xy = anchor_ref[0]                                        # (2, N) lane-dense
            n = xy.shape[1]
            x = jnp.clip(xy[0:1, :] * fmax, 0.0, fmax)                # (1, N)
            y = jnp.clip(xy[1:2, :] * fmax, 0.0, fmax)                # (1, N)
            r = jax.lax.broadcasted_iota(jnp.int32, (HW, n), 0).astype(jnp.float32)
        # Decompose flat pixel index r = iy*side + ix on the VPU.  The f32 reciprocal
        # estimate is followed by one exact (integer-valued f32) correction step, so
        # the decomposition is exact for any side, not just powers of two.
        iy = jnp.floor((r + 0.5) * (1.0 / side))
        iy = jnp.where(iy * side > r, iy - 1.0, iy)
        iy = jnp.where((iy + 1.0) * side <= r, iy + 1.0, iy)
        ix = r - iy * side
        wy = jnp.maximum(0.0, 1.0 - jnp.abs(iy - y))                  # tent kernel in y
        wx = jnp.maximum(0.0, 1.0 - jnp.abs(ix - x))                  # tent kernel in x
        w_ref[...] = (wy * wx).astype(w_ref.dtype)                    # bilinear weights

    feat = feat_ref[0]                                                # (c_tile, HW)
    if compute_bf16 and feat.dtype != jnp.bfloat16:
        feat = feat.astype(jnp.bfloat16)
    w = w_ref[...]

    if store_nc:
        # (N, HW) . (c_tile, HW)^T -> (N, c_tile): flash-attention-style A.B^T; the
        # big feature block is consumed in its native layout and the output is stored
        # lane-dense in c_tile (no wrapper transpose of the result).
        out = jax.lax.dot_general(w, feat, (((1,), (1,)), ((), ())),
                                  preferred_element_type=jnp.float32)
    else:
        # (c_tile, HW) . (HW, N) -> (c_tile, N): natural matmul, lane-dense in N.
        out = jax.lax.dot_general(feat, w, (((1,), (0,)), ((), ())),
                                  preferred_element_type=jnp.float32)
    out_ref[0] = out.astype(out_ref.dtype)


def interpolation_layer(feature_maps, init_potential_anchor, *, use_bf16=False,
                        c_tile=None):
    """feature_maps: (B, C, H, W); init_potential_anchor: (B, N, 2) in [0,1] -> (B, N, C)."""
    B, C, H, W = feature_maps.shape
    # The reference computes flat index y*H + x, which only makes sense for H == W.
    assert H == W, "interpolation_layer reference semantics require square feature maps"
    N = init_potential_anchor.shape[1]
    HW = H * W
    dtype = feature_maps.dtype
    itemsize = jnp.dtype(dtype).itemsize
    compute_bf16 = bool(use_bf16) or dtype == jnp.bfloat16
    w_dtype = jnp.bfloat16 if compute_bf16 else jnp.float32
    w_itemsize = jnp.dtype(w_dtype).itemsize

    feat_flat = feature_maps.reshape(B, C, HW)
    anchors = init_potential_anchor.astype(jnp.float32)

    def _rup(v, m):
        return ((v + m - 1) // m) * m

    hw_lanes = _rup(HW, 128)

    # ---- Generation-aware VMEM budget (v5e/v6e: 128 MiB, v7x: 64 MiB per core). ----
    try:
        vmem_cap = int(pltpu.get_tpu_info().vmem_capacity_bytes)
    except Exception:
        vmem_cap = 64 << 20                     # conservative (v7x-sized) fallback
    budget = int(vmem_cap * 0.70)               # headroom for compiler scratch / sems

    # Upper bound on the W scratch (either (N, HW) or (HW, N) layout).
    w_bytes_bound = max(_rup(N, 8) * hw_lanes, _rup(HW, 8) * _rup(N, 128)) * w_itemsize

    # ---- Channel tiling from a byte budget (cdiv grid, any C). ----
    if c_tile is None:
        per_buf = max((budget - w_bytes_bound - (4 << 20)) // 3, 128 * 1024)
        if _rup(C, 8) * hw_lanes * itemsize <= per_buf:
            c_tile = C
        else:
            ct = per_buf // (hw_lanes * itemsize)
            c_tile = int(min(max((ct // 128) * 128, 128), C))
    c_tile = int(min(c_tile, C))
    num_c = pl.cdiv(C, c_tile)

    # ---- Output orientation: keep stores lane-dense, avoid wrapper transposes. ----
    store_nc = (c_tile >= 128) or (c_tile >= N)
    if c_tile < C:
        # Tiled C is the lane dim of the (N, c_tile) output block and the sublane dim
        # of the (c_tile, HW) feature block -> keep it 128-aligned.
        assert store_nc and c_tile % 128 == 0, "channel tiles must be 128-aligned"

    # Use both TensorCores on v7x when B == 1 by splitting the channel sweep into a
    # leading parallel axis (no effect on single-core generations).
    n_split = 2 if (B == 1 and num_c >= 2 and num_c % 2 == 0) else 1
    num_c_inner = num_c // n_split

    if store_nc:
        anchor_in = anchors                                             # (B, N, 2)
        anchor_spec = pl.BlockSpec((1, N, 2), lambda b, s, j: (b, 0, 0))
        out_shape = jax.ShapeDtypeStruct((B, N, C), dtype)
        out_spec = pl.BlockSpec((1, N, c_tile),
                                lambda b, s, j: (b, 0, s * num_c_inner + j))
        w_scratch = pltpu.VMEM((N, HW), w_dtype)
    else:
        # Lane-dense anchor rows: x and y each arrive as a (1, N) row.
        anchor_in = jnp.transpose(anchors, (0, 2, 1))                   # (B, 2, N)
        anchor_spec = pl.BlockSpec((1, 2, N), lambda b, s, j: (b, 0, 0))
        out_shape = jax.ShapeDtypeStruct((B, C, N), dtype)
        out_spec = pl.BlockSpec((1, c_tile, N),
                                lambda b, s, j: (b, s * num_c_inner + j, 0))
        w_scratch = pltpu.VMEM((HW, N), w_dtype)

    feat_spec = pl.BlockSpec((1, c_tile, HW),
                             lambda b, s, j: (b, s * num_c_inner + j, 0))

    # ---- Scoped-VMEM limit from the actual footprint, capped per generation. ----
    feat_blk = _rup(c_tile, 8) * hw_lanes * itemsize
    if store_nc:
        out_blk = _rup(N, 8) * _rup(c_tile, 128) * itemsize
        anc_blk = _rup(N, 8) * 128 * 4
        w_bytes = _rup(N, 8) * hw_lanes * w_itemsize
    else:
        out_blk = _rup(c_tile, 8) * _rup(N, 128) * itemsize
        anc_blk = 8 * _rup(N, 128) * 4
        w_bytes = _rup(HW, 8) * _rup(N, 128) * w_itemsize
    vmem_est = 2 * (feat_blk + out_blk + anc_blk) + w_bytes + (2 << 20)
    vmem_limit = int(min(max(vmem_est, 16 << 20), int(vmem_cap * 0.85)))

    kernel = functools.partial(_interp_kernel, side=H, store_nc=store_nc,
                               compute_bf16=compute_bf16)
    out = pl.pallas_call(
        kernel,
        out_shape=out_shape,
        grid=(B, n_split, num_c_inner),
        in_specs=[anchor_spec, feat_spec],
        out_specs=out_spec,
        scratch_shapes=[w_scratch],
        compiler_params=pltpu.CompilerParams(
            dimension_semantics=("parallel", "parallel", "arbitrary"),
            vmem_limit_bytes=vmem_limit),
    )(anchor_in, feat_flat)

    if not store_nc:
        out = jnp.transpose(out, (0, 2, 1))     # tiny-C fallback path only
    return out


def _reference(feature_maps, init_potential_anchor):
    # Pure-JAX mirror of the PyTorch module for correctness checking.
    B, C, H, W = feature_maps.shape
    pa = jnp.clip(init_potential_anchor * (H - 1), 0.0, float(H - 1))
    lt = jnp.floor(pa).astype(jnp.int32)
    rb = jnp.ceil(pa).astype(jnp.int32)
    flat = feature_maps.reshape(B, C, H * W)

    def gather(ix, iy):
        idx = iy * H + ix                                               # (B, N)
        vals = jnp.take_along_axis(flat, idx[:, None, :], axis=2)       # (B, C, N)
        return jnp.transpose(vals, (0, 2, 1))                           # (B, N, C)

    vals_lt = gather(lt[:, :, 0], lt[:, :, 1])
    vals_rb = gather(rb[:, :, 0], rb[:, :, 1])
    vals_lb = gather(lt[:, :, 0], rb[:, :, 1])
    vals_rt = gather(rb[:, :, 0], lt[:, :, 1])

    off = pa - lt.astype(pa.dtype)
    off_x = off[:, :, 0:1]
    off_y = off[:, :, 1:2]
    vals_t = vals_lt + (vals_rt - vals_lt) * off_x
    vals_b = vals_lb + (vals_rb - vals_lb) * off_x
    return vals_t + (vals_b - vals_t) * off_y


if __name__ == "__main__":
    key = jax.random.PRNGKey(0)
    ks = jax.random.split(key, 6)

    # Case 1: tiny C (< 128, < N) -> (C, N) store orientation + wrapper transpose.
    B, C, H, W, N = 2, 4, 16, 16, 8
    feat1 = jax.random.normal(ks[0], (B, C, H, W), dtype=jnp.float32)
    anc1 = jax.random.uniform(ks[1], (B, N, 2), dtype=jnp.float32)
    anc1 = anc1.at[0, 0].set(jnp.array([0.0, 1.0], jnp.float32))   # exact grid corners
    anc1 = anc1.at[0, 1].set(jnp.array([1.0, 1.0], jnp.float32))
    out1 = jax.block_until_ready(interpolation_layer(feat1, anc1))
    ref1 = _reference(feat1, anc1)
    assert out1.shape == (B, N, C)
    assert jnp.allclose(out1, ref1, atol=1e-5, rtol=1e-5), "case 1 mismatch vs reference"

    # Case 2: forced channel tiling with a ragged last tile (cdiv path), lane-dense
    # (N, c_tile) stores, W-scratch persistence across the channel sweep.
    B, C, H, W, N = 2, 320, 16, 16, 16
    feat2 = jax.random.normal(ks[2], (B, C, H, W), dtype=jnp.float32)
    anc2 = jax.random.uniform(ks[3], (B, N, 2), dtype=jnp.float32)
    out2 = jax.block_until_ready(interpolation_layer(feat2, anc2, c_tile=128))
    ref2 = _reference(feat2, anc2)
    assert out2.shape == (B, N, C)
    assert jnp.allclose(out2, ref2, atol=1e-5, rtol=1e-5), "case 2 mismatch vs reference"

    # Case 3: B == 1 with an even channel sweep -> 2-way parallel core split path.
    B, C, H, W, N = 1, 256, 16, 16, 8
    feat3 = jax.random.normal(ks[4], (B, C, H, W), dtype=jnp.float32)
    anc3 = jax.random.uniform(ks[5], (B, N, 2), dtype=jnp.float32)
    out3 = jax.block_until_ready(interpolation_layer(feat3, anc3, c_tile=128))
    ref3 = _reference(feat3, anc3)
    assert out3.shape == (B, N, C)
    assert jnp.allclose(out3, ref3, atol=1e-5, rtol=1e-5), "case 3 mismatch vs reference"

    print("KERNEL_OK")
</pallas_src>

<mosaic_0001>
module attributes {stable_mosaic.version = 11 : i64} {
  func.func @_interp_kernel(%arg0: i32, %arg1: i32, %arg2: i32, %arg3: memref<1x2x8xf32, #tpu.memory_space<vmem>>, %arg4: memref<1x4x256xf32, #tpu.memory_space<vmem>>, %arg5: memref<1x4x8xf32, #tpu.memory_space<vmem>>, %arg6: memref<256x8xf32, #tpu.memory_space<vmem>>) attributes {dimension_semantics = [#tpu.dimension_semantics<parallel>, #tpu.dimension_semantics<parallel>, #tpu.dimension_semantics<arbitrary>], iteration_bounds = array<i64: 2, 1, 1>, scalar_prefetch = 0 : i64, scratch_operands = 1 : i64, tpu.core_type = #tpu.core_type<tc>, window_params = [{transform_indices = @transform_0, window_bounds = array<i64: 1, 2, 8>}, {transform_indices = @transform_1, window_bounds = array<i64: 1, 4, 256>}, {transform_indices = @transform_2, window_bounds = array<i64: 1, 4, 8>}]} {
    %c0_i32 = arith.constant 0 : i32
    %0 = arith.cmpi eq, %arg2, %c0_i32 : i32
    %1 = arith.extui %0 : i1 to i32
    %c0_i32_0 = arith.constant 0 : i32
    %2 = arith.cmpi ne, %1, %c0_i32_0 : i32
    scf.if %2 {
      %c0_8 = arith.constant 0 : index
      %c0_9 = arith.constant 0 : index
      %c0_10 = arith.constant 0 : index
      %10 = vector.load %arg3[%c0_8, %c0_9, %c0_10] : memref<1x2x8xf32, #tpu.memory_space<vmem>>, vector<1x2x8xf32>
      %11 = vector.shape_cast %10 : vector<1x2x8xf32> to vector<2x8xf32>
      %12 = vector.extract_strided_slice %11 {offsets = [0, 0], sizes = [1, 8], strides = [1, 1]} : vector<2x8xf32> to vector<1x8xf32>
      %cst_11 = arith.constant 1.500000e+01 : f32
      %13 = vector.broadcast %cst_11 : f32 to vector<1x8xf32>
      %14 = arith.mulf %12, %13 : vector<1x8xf32>
      %cst_12 = arith.constant 0.000000e+00 : f32
      %cst_13 = arith.constant 1.500000e+01 : f32
      %15 = vector.broadcast %cst_12 : f32 to vector<1x8xf32>
      %16 = arith.maximumf %15, %14 : vector<1x8xf32>
      %17 = vector.broadcast %cst_13 : f32 to vector<1x8xf32>
      %18 = arith.minimumf %17, %16 : vector<1x8xf32>
      %19 = vector.extract_strided_slice %11 {offsets = [1, 0], sizes = [1, 8], strides = [1, 1]} : vector<2x8xf32> to vector<1x8xf32>
      %cst_14 = arith.constant 1.500000e+01 : f32
      %20 = vector.broadcast %cst_14 : f32 to vector<1x8xf32>
      %21 = arith.mulf %19, %20 : vector<1x8xf32>
      %cst_15 = arith.constant 0.000000e+00 : f32
      %cst_16 = arith.constant 1.500000e+01 : f32
      %22 = vector.broadcast %cst_15 : f32 to vector<1x8xf32>
      %23 = arith.maximumf %22, %21 : vector<1x8xf32>
      %24 = vector.broadcast %cst_16 : f32 to vector<1x8xf32>
      %25 = arith.minimumf %24, %23 : vector<1x8xf32>
      %26 = tpu.iota {dimensions = array<i32: 0>} : vector<256x8xi32>
      %27 = arith.sitofp %26 : vector<256x8xi32> to vector<256x8xf32>
      %cst_17 = arith.constant 5.000000e-01 : f32
      %28 = vector.broadcast %cst_17 : f32 to vector<256x8xf32>
      %29 = arith.addf %27, %28 : vector<256x8xf32>
      %cst_18 = arith.constant 6.250000e-02 : f32
      %30 = vector.broadcast %cst_18 : f32 to vector<256x8xf32>
      %31 = arith.mulf %29, %30 : vector<256x8xf32>
      %32 = math.floor %31 : vector<256x8xf32>
      %cst_19 = arith.constant 1.600000e+01 : f32
      %33 = vector.broadcast %cst_19 : f32 to vector<256x8xf32>
      %34 = arith.mulf %32, %33 : vector<256x8xf32>
      %35 = arith.cmpf ogt, %34, %27 : vector<256x8xf32>
      %cst_20 = arith.constant 1.000000e+00 : f32
      %36 = vector.broadcast %cst_20 : f32 to vector<256x8xf32>
      %37 = arith.subf %32, %36 : vector<256x8xf32>
      %38 = arith.select %35, %37, %32 : vector<256x8xi1>, vector<256x8xf32>
      %cst_21 = arith.constant 1.000000e+00 : f32
      %39 = vector.broadcast %cst_21 : f32 to vector<256x8xf32>
      %40 = arith.addf %38, %39 : vector<256x8xf32>
      %cst_22 = arith.constant 1.600000e+01 : f32
      %41 = vector.broadcast %cst_22 : f32 to vector<256x8xf32>
      %42 = arith.mulf %40, %41 : vector<256x8xf32>
      %43 = arith.cmpf ole, %42, %27 : vector<256x8xf32>
      %cst_23 = arith.constant 1.000000e+00 : f32
      %44 = vector.broadcast %cst_23 : f32 to vector<256x8xf32>
      %45 = arith.addf %38, %44 : vector<256x8xf32>
      %46 = arith.select %43, %45, %38 : vector<256x8xi1>, vector<256x8xf32>
      %cst_24 = arith.constant 1.600000e+01 : f32
      %47 = vector.broadcast %cst_24 : f32 to vector<256x8xf32>
      %48 = arith.mulf %46, %47 : vector<256x8xf32>
      %49 = arith.subf %27, %48 : vector<256x8xf32>
      %50 = vector.broadcast %25 : vector<1x8xf32> to vector<256x8xf32>
      %51 = arith.subf %46, %50 : vector<256x8xf32>
      %52 = math.absf %51 : vector<256x8xf32>
      %cst_25 = arith.constant 1.000000e+00 : f32
      %53 = vector.broadcast %cst_25 : f32 to vector<256x8xf32>
      %54 = arith.subf %53, %52 : vector<256x8xf32>
      %cst_26 = arith.constant 0.000000e+00 : f32
      %55 = vector.broadcast %cst_26 : f32 to vector<256x8xf32>
      %56 = arith.maximumf %55, %54 : vector<256x8xf32>
      %57 = vector.broadcast %18 : vector<1x8xf32> to vector<256x8xf32>
      %58 = arith.subf %49, %57 : vector<256x8xf32>
      %59 = math.absf %58 : vector<256x8xf32>
      %cst_27 = arith.constant 1.000000e+00 : f32
      %60 = vector.broadcast %cst_27 : f32 to vector<256x8xf32>
      %61 = arith.subf %60, %59 : vector<256x8xf32>
      %cst_28 = arith.constant 0.000000e+00 : f32
      %62 = vector.broadcast %cst_28 : f32 to vector<256x8xf32>
      %63 = arith.maximumf %62, %61 : vector<256x8xf32>
      %64 = arith.mulf %56, %63 : vector<256x8xf32>
      %c0_29 = arith.constant 0 : index
      %c0_30 = arith.constant 0 : index
      %65 = vector.load %arg6[%c0_29, %c0_30] : memref<256x8xf32, #tpu.memory_space<vmem>>, vector<256x8xf32>
      tpu.vector_store %arg6[%c0_29, %c0_30], %64 {strides = array<i32>} : memref<256x8xf32, #tpu.memory_space<vmem>>, vector<256x8xf32>,
    } else {
    }
    %c0 = arith.constant 0 : index
    %c0_1 = arith.constant 0 : index
    %c0_2 = arith.constant 0 : index
    %3 = vector.load %arg4[%c0, %c0_1, %c0_2] : memref<1x4x256xf32, #tpu.memory_space<vmem>>, vector<1x4x256xf32>
    %4 = vector.shape_cast %3 : vector<1x4x256xf32> to vector<4x256xf32>
    %c0_3 = arith.constant 0 : index
    %c0_4 = arith.constant 0 : index
    %5 = vector.load %arg6[%c0_3, %c0_4] : memref<256x8xf32, #tpu.memory_space<vmem>>, vector<256x8xf32>
    %cst = arith.constant dense<0.000000e+00> : vector<4x8xf32>
    %6 = tpu.matmul %4, %5, %cst {dimension_numbers = #tpu.dot_dimension_numbers<[1], [0], [0], [1], [0, 0, 1, 1], [], []>} : vector<4x256xf32>, vector<256x8xf32>, vector<4x8xf32> -> vector<4x8xf32>
    %c0_5 = arith.constant 0 : index
    %c0_6 = arith.constant 0 : index
    %c0_7 = arith.constant 0 : index
    %7 = vector.load %arg5[%c0_5, %c0_6, %c0_7] : memref<1x4x8xf32, #tpu.memory_space<vmem>>, vector<1x4x8xf32>
    %8 = vector.shape_cast %7 : vector<1x4x8xf32> to vector<4x8xf32>
    %9 = vector.shape_cast %6 : vector<4x8xf32> to vector<1x4x8xf32>
    tpu.vector_store %arg5[%c0_5, %c0_6, %c0_7], %9 {strides = array<i32>} : memref<1x4x8xf32, #tpu.memory_space<vmem>>, vector<1x4x8xf32>,
    return
  }
  func.func @transform_0(%arg0: i32, %arg1: i32, %arg2: i32) -> (i32, i32, i32) {
    %c0_i32 = arith.constant 0 : i32
    %c0_i32_0 = arith.constant 0 : i32
    %c0_i32_1 = arith.constant 0 : i32
    return %arg0, %c0_i32, %c0_i32_0 : i32, i32, i32
  }
  func.func @transform_1(%arg0: i32, %arg1: i32, %arg2: i32) -> (i32, i32, i32) {
    %c1_i32 = arith.constant 1 : i32
    %0 = arith.muli %arg1, %c1_i32 : i32
    %1 = arith.addi %0, %arg2 : i32
    %c0_i32 = arith.constant 0 : i32
    %c0_i32_0 = arith.constant 0 : i32
    return %arg0, %1, %c0_i32 : i32, i32, i32
  }
  func.func @transform_2(%arg0: i32, %arg1: i32, %arg2: i32) -> (i32, i32, i32) {
    %c1_i32 = arith.constant 1 : i32
    %0 = arith.muli %arg1, %c1_i32 : i32
    %1 = arith.addi %0, %arg2 : i32
    %c0_i32 = arith.constant 0 : i32
    %c0_i32_0 = arith.constant 0 : i32
    return %arg0, %1, %c0_i32 : i32, i32, i32
  }
}

</mosaic_0001>

<llo_original>
// kernel: tpu_custom_call.1
$region0: #{tpu_custom_call.1}
  #allocation0 [shape = 'u32[]', space=smem, size = 0x4, offset = 0x4, fixed_abs, tag = 'smem constant byte address 0x4 - core index']
  #allocation1 [shape = 'u32[144,128]{1,0:T(1,128)}', space=vmem, size = 0x12000, scoped, tag = 'internal scratch']
  #allocation2 [shape = 'f32[256,8]{1,0:T(8,128)}', space=vmem, size = 0x20000, scoped, tag = 'scratch operand']
  %s0 = inlined_call_operand.hbm [shape: f32[2,2,8], index: 0, kind: input, shape index: {}]
  %s1 = inlined_call_operand.hbm [shape: f32[2,4,256], index: 1, kind: input, shape index: {}]
  %s2 = inlined_call_operand.hbm [shape: f32[2,4,8], index: 2, kind: output, shape index: {}]
  %s3 = sld [smem:[#allocation0]]
  $region53: #{tpu_custom_call.1} parent=0
    _
  %s5 = ssub.s32 1, %s3
  %s6 = scalar_select 0, %s5, %s3
  $region1: #{tpu_custom_call.1} parent=0
    #allocation3 [shape = 'u8[2048]{0}', space=vmem, size = 0x800, scoped, tag = 'input window, operand 0']
    #allocation4 [shape = 's32[2]{0}', space=sflag, size = 0x8, scoped, tag = 'scoped memory for tpu_custom_call.1']
    #allocation5 [shape = 's32[2]{0}', space=sflag, size = 0x8, scoped, tag = 'scoped memory for tpu_custom_call.1']
    #allocation6 [shape = 'u8[8192]{0}', space=vmem, size = 0x2000, scoped, tag = 'input window, operand 1']
    #allocation7 [shape = 's32[2]{0}', space=sflag, size = 0x8, scoped, tag = 'scoped memory for tpu_custom_call.1']
    #allocation8 [shape = 'u8[4096]{0}', space=vmem, size = 0x1000, scoped, tag = 'output window, operand 0']
    %7 = vsyncpa [#allocation4], 0
    %s8 = scalar_lea.sflag [#allocation4], 1
    %9 = vsyncpa %s8, 0
    %10 = vsyncpa [#allocation7], 0
    %s11 = scalar_lea.sflag [#allocation7], 1
    %12 = vsyncpa %s11, 0
    %13 = vsyncpa [#allocation5], 0
    %s14 = scalar_lea.sflag [#allocation5], 1
    %15 = vsyncpa %s14, 0
    loop: start=0, step=1, limit=4
    $region2: #{tpu_custom_call.1} parent=1 // loop_pre_header
      _
    $region3: #{tpu_custom_call.1} parent=1 // loop_header
      %s17 = sphi 0, %s21
      %p18 = scmp.ge.s32.totalorder %s17, 4
      %s24 = sphi 0, %s43
      %s25 = sphi 0, %s39
      %s26 = sphi 0, %s35
      %s27 = sphi 0, %s24
      %s28 = sphi 0, %s25
      %s29 = sphi 0, %s26
      %s30 = sphi 0, %s27
      %s31 = sphi 0, %s28
      %s32 = sphi 0, %s29
      %s46 = sphi 0, %s48
      %s49 = sphi 0, %s46
      %s50 = sphi 0, %s49
      %s66 = sphi 0, %s50
      %s76 = sphi 0, %s78
      %s79 = sphi 0, %s76
      %s80 = sphi 0, %s79
      %s96 = sphi 0, %s80
      %s106 = sphi 0, %s108
      %s109 = sphi 0, %s106
      %s110 = sphi 0, %s109
      %s126 = sphi 0, %s110
    $region4: #{tpu_custom_call.1} parent=1 // loop_header_branch
      %20 = sbr.rel (%p18) target = $region8
    $region5: #{tpu_custom_call.1} parent=1 // loop_body
      %s22 = ssub.s32 %s17, 1
      %s23 = ssub.s32 %s17, 2
      %s33 = sadd.s32 1, %s26
      %p34 = scmp.ge.s32.totalorder %s33, 1
      %s35 = scalar_select %p34, 0, %s33
      %s36 = sadd.s32 1, %s25
      %s37 = scalar_select %p34, %s36, %s25
      %p38 = scmp.ge.s32.totalorder %s37, 1
      %s39 = scalar_select %p38, 0, %s37
      %s40 = sadd.s32 1, %s24
      %s41 = scalar_select %p38, %s40, %s24
      %p42 = scmp.ge.s32.totalorder %s41, 2
      %s43 = scalar_select %p42, 0, %s41
      %s44 = ssub.s32 %s24, %s43
      %p45 = scmp.eq.s32.totalorder %s44, 0
      %s47 = sadd.s32 %s46, 1
      %s48 = scalar_select %p45, %s46, %s47
      %p51 = pneg %p45
      %p52 = scmp.eq.s32.totalorder %s17, 1
      %p53 = por %p51, %p52
      %p54 = scmp.ne.s32.totalorder %s46, %s49
      %p55 = scmp.eq.s32.totalorder %s17, 0
      %p56 = por %p54, %p55
      %p57 = scmp.ne.s32.totalorder %s46, %s49
      %p58 = scmp.eq.s32.totalorder %s22, 1
      %p59 = por %p57, %p58
      %p60 = scmp.ne.s32.totalorder %s49, %s50
      %p61 = scmp.eq.s32.totalorder %s22, 0
      %p62 = por %p60, %p61
      %p63 = scmp.ne.s32.totalorder %s49, %s50
      %p64 = scmp.eq.s32.totalorder %s23, 1
      %p65 = por %p63, %p64
      %p67 = scmp.ne.s32.totalorder %s50, %s66
      %p68 = scmp.eq.s32.totalorder %s23, 0
      %p69 = por %p67, %p68
      %s70 = sadd.s32 %s25, %s26
      %s71 = sadd.s32 %s39, %s35
      %s72 = ssub.s32 %s24, %s43
      %s73 = ssub.s32 %s70, %s71
      %s74 = sor.u32 %s72, %s73
      %p75 = scmp.eq.s32.totalorder %s74, 0
      %s77 = sadd.s32 %s76, 1
      %s78 = scalar_select %p75, %s76, %s77
      %p81 = pneg %p75
      %p82 = scmp.eq.s32.totalorder %s17, 1
      %p83 = por %p81, %p82
      %p84 = scmp.ne.s32.totalorder %s76, %s79
      %p85 = scmp.eq.s32.totalorder %s17, 0
      %p86 = por %p84, %p85
      %p87 = scmp.ne.s32.totalorder %s76, %s79
      %p88 = scmp.eq.s32.totalorder %s22, 1
      %p89 = por %p87, %p88
      %p90 = scmp.ne.s32.totalorder %s79, %s80
      %p91 = scmp.eq.s32.totalorder %s22, 0
      %p92 = por %p90, %p91
      %p93 = scmp.ne.s32.totalorder %s79, %s80
      %p94 = scmp.eq.s32.totalorder %s23, 1
      %p95 = por %p93, %p94
      %p97 = scmp.ne.s32.totalorder %s80, %s96
      %p98 = scmp.eq.s32.totalorder %s23, 0
      %p99 = por %p97, %p98
      %s100 = sadd.s32 %s25, %s26
      %s101 = sadd.s32 %s39, %s35
      %s102 = ssub.s32 %s24, %s43
      %s103 = ssub.s32 %s100, %s101
      %s104 = sor.u32 %s102, %s103
      %p105 = scmp.eq.s32.totalorder %s104, 0
      %s107 = sadd.s32 %s106, 1
      %s108 = scalar_select %p105, %s106, %s107
      %p111 = pneg %p105
      %p112 = scmp.eq.s32.totalorder %s17, 1
      %p113 = por %p111, %p112
      %p114 = scmp.ne.s32.totalorder %s106, %s109
      %p115 = scmp.eq.s32.totalorder %s17, 0
      %p116 = por %p114, %p115
      %p117 = scmp.ne.s32.totalorder %s106, %s109
      %p118 = scmp.eq.s32.totalorder %s22, 1
      %p119 = por %p117, %p118
      %p120 = scmp.ne.s32.totalorder %s109, %s110
      %p121 = scmp.eq.s32.totalorder %s22, 0
      %p122 = por %p120, %p121
      %p123 = scmp.ne.s32.totalorder %s109, %s110
      %p124 = scmp.eq.s32.totalorder %s23, 1
      %p125 = por %p123, %p124
      %p127 = scmp.ne.s32.totalorder %s110, %s126
      %p128 = scmp.eq.s32.totalorder %s23, 0
      %p129 = por %p127, %p128
      %p130 = scmp.le.s32.totalorder 1, %s17
      %p131 = scmp.lt.s32.totalorder %s17, 3
      %p132 = pnand %p130, %p131
      %p133 = pneg %p132
      // Predicated region
      $region9: #{tpu_custom_call.1} parent=5 // pred_check
        _
      $region10: #{tpu_custom_call.1} parent=5 // pred_check_branch
        %135 = sbr.rel (%p132) target = $region12
      $region11: #{tpu_custom_call.1} parent=5 // pred_region
        %s136 = ssub.s32 %s17, 1
      $region12: #{tpu_custom_call.1} parent=5 // pred_fallthru
        _
      %p137 = scmp.lt.s32.totalorder %s17, 2
      // Predicated region
      $region13: #{tpu_custom_call.1} parent=5 // pred_check
        %p138 = pneg %p137
      $region14: #{tpu_custom_call.1} parent=5 // pred_check_branch
        %140 = sbr.rel (%p138) target = $region16
      $region15: #{tpu_custom_call.1} parent=5 // pred_region
        // Predicated region
        $region17: #{tpu_custom_call.1} parent=15 // pred_check
          %p141 = pneg %p56
        $region18: #{tpu_custom_call.1} parent=15 // pred_check_branch
          %143 = sbr.rel (%p141) target = $region20
        $region19: #{tpu_custom_call.1} parent=15 // pred_region
          %s144 = sand.u32 %s46, 1
          %s145 = scalar_lea.sflag [#allocation4], %s144
          %s146 = sand.u32 %s46, 1
          %s147 = smul.addr %s146, 2
          %s148 = scalar_lea.vmem [#allocation3], %s147
          %s150 = ssub.s32 32, 32
          %151 = vsyncadd %s145, %s150
          %s152 = smul.addr %s24, 32
          %s153 = scalar_lea.hbm %s0, %s152
          %s155 = sshll.u32 %s148, 4
          %s156 = int_to_ptr.vmem [resolvable:$true] %s155
          %158 = dma.hbm_to_vmem [thread:$0]  %s153, 32, %s156, %s145
        $region20: #{tpu_custom_call.1} parent=15 // pred_fallthru
          _
        // Predicated region
        $region21: #{tpu_custom_call.1} parent=15 // pred_check
          %p159 = pneg %p86
        $region22: #{tpu_custom_call.1} parent=15 // pred_check_branch
          %161 = sbr.rel (%p159) target = $region24
        $region23: #{tpu_custom_call.1} parent=15 // pred_region
          %s162 = sand.u32 %s76, 1
          %s163 = scalar_lea.sflag [#allocation7], %s162
          %s164 = sand.u32 %s76, 1
          %s165 = smul.addr %s164, 8
          %s166 = scalar_lea.vmem [#allocation6], %s165
          %s167 = sadd.s32 %s25, %s26
          %s169 = ssub.s32 128, 128
          %170 = vsyncadd %s163, %s169
          %s171 = smul.addr %s167, 2
          %s172 = smul.addr %s24, 2
          %s173 = sadd.s32 %s171, %s172
          %s174 = smul.addr %s173, 64
          %s175 = scalar_lea.hbm %s1, %s174
          %s177 = sshll.u32 %s166, 4
          %s178 = int_to_ptr.vmem [resolvable:$true] %s177
          %180 = dma.hbm_to_vmem [thread:$0]  %s175, 128, %s178, %s163
        $region24: #{tpu_custom_call.1} parent=15 // pred_fallthru
          _
      $region16: #{tpu_custom_call.1} parent=5 // pred_fallthru
        _
      %p181 = scmp.le.s32.totalorder 1, %s17
      %p182 = scmp.lt.s32.totalorder %s17, 3
      %p183 = pnand %p181, %p182
      %p184 = pneg %p183
      // Predicated region
      $region25: #{tpu_custom_call.1} parent=5 // pred_check
        _
      $region26: #{tpu_custom_call.1} parent=5 // pred_check_branch
        %186 = sbr.rel (%p183) target = $region28
      $region27: #{tpu_custom_call.1} parent=5 // pred_region
        %s187 = ssub.s32 %s17, 1
        %s188 = sand.u32 %s49, 1
        %s189 = scalar_lea.sflag [#allocation4], %s188
        %s190 = sand.u32 %s49, 1
        %s191 = smul.addr %s190, 2
        %s192 = scalar_lea.vmem [#allocation3], %s191
        // Predicated region
        $region29: #{tpu_custom_call.1} parent=27 // pred_check
          %p193 = pneg %p62
        $region30: #{tpu_custom_call.1} parent=27 // pred_check_branch
          %195 = sbr.rel (%p193) target = $region32
        $region31: #{tpu_custom_call.1} parent=27 // pred_region
          %196 = dma.done %s189, 32
        $region32: #{tpu_custom_call.1} parent=27 // pred_fallthru
          _
        %s197 = sand.u32 %s79, 1
        %s198 = scalar_lea.sflag [#allocation7], %s197
        %s199 = sand.u32 %s79, 1
        %s200 = smul.addr %s199, 8
        %s201 = scalar_lea.vmem [#allocation6], %s200
        // Predicated region
        $region33: #{tpu_custom_call.1} parent=27 // pred_check
          %p202 = pneg %p92
        $region34: #{tpu_custom_call.1} parent=27 // pred_check_branch
          %204 = sbr.rel (%p202) target = $region36
        $region35: #{tpu_custom_call.1} parent=27 // pred_region
          %205 = dma.done %s198, 128
        $region36: #{tpu_custom_call.1} parent=27 // pred_fallthru
          _
        %s206 = sand.u32 %s49, 1
        %s207 = scalar_lea.sflag [#allocation4], %s206
        %s208 = sand.u32 %s49, 1
        %s209 = smul.addr %s208, 2
        %s210 = scalar_lea.vmem [#allocation3], %s209
        %p211 = pneg %p62
        %p212 = pneg %p59
        %s213 = sand.u32 %s79, 1
        %s214 = scalar_lea.sflag [#allocation7], %s213
        %s215 = sand.u32 %s79, 1
        %s216 = smul.addr %s215, 8
        %s217 = scalar_lea.vmem [#allocation6], %s216
        %p218 = pneg %p92
        %p219 = pneg %p89
        %p220 = pneg %p122
        %p221 = pneg %p119
        %s222 = sand.u32 %s109, 1
        %s223 = scalar_lea.sflag [#allocation5], %s222
        %s224 = sand.u32 %s109, 1
        %s225 = smul.addr %s224, 4
        %s226 = scalar_lea.vmem [#allocation8], %s225
        %s227 = sadd.s32 %s28, %s29
        %s228 = sadd.s32 %s28, %s29
        %p229 = scmp.eq.s32.totalorder %s29, 0
        // Predicated region
        $region37: #{tpu_custom_call.1} parent=27 // pred_check
          %p230 = pneg %p229
        $region38: #{tpu_custom_call.1} parent=27 // pred_check_branch
          %232 = sbr.rel (%p230) target = $region40
        $region39: #{tpu_custom_call.1} parent=27 // pred_region
          %v233 = vld [vmem:[%s192] sm:$0x3]
          %v234 = vmul.f32 %v233, 15.0
          %v235 = vmax.f32 %v234, 0.0
          %v236 = vmin.f32 %v235, 15.0
          %v237 = vlaneseq
          %v238 = vshrl.u32 %v237, 7
          %v239 = vadd.s32 %v238, 8
          %v240 = vadd.s32 %v238, 16
          %v241 = vadd.s32 %v238, 24
          %v242 = vadd.s32 %v238, 32
          %v243 = vadd.s32 %v238, 40
          %v244 = vadd.s32 %v238, 48
          %v245 = vadd.s32 %v238, 56
          %v246 = vadd.s32 %v238, 64
          %v247 = vadd.s32 %v238, 72
          %v248 = vadd.s32 %v238, 80
          %v249 = vadd.s32 %v238, 88
          %v250 = vadd.s32 %v238, 96
          %v251 = vadd.s32 %v238, 104
          %v252 = vadd.s32 %v238, 112
          %v253 = vadd.s32 %v238, 120
          %v254 = vadd.s32 %v238, 128
          %v255 = vadd.s32 %v238, 136
          %v256 = vadd.s32 %v238, 144
          %v257 = vadd.s32 %v238, 152
          %v258 = vadd.s32 %v238, 160
          %v259 = vadd.s32 %v238, 168
          %v260 = vadd.s32 %v238, 176
          %v261 = vadd.s32 %v238, 184
          %v262 = vadd.s32 %v238, 192
          %v263 = vadd.s32 %v238, 200
          %v264 = vadd.s32 %v238, 208
          %v265 = vadd.s32 %v238, 216
          %v266 = vadd.s32 %v238, 224
          %v267 = vadd.s32 %v238, 232
          %v268 = vadd.s32 %v238, 240
          %v269 = vadd.s32 %v238, 248
          %v270 = vcvt.s32.f32 %v238
          %v271 = vcvt.s32.f32 %v239
          %v272 = vcvt.s32.f32 %v240
          %v273 = vcvt.s32.f32 %v241
          %v274 = vcvt.s32.f32 %v242
          %v275 = vcvt.s32.f32 %v243
          %v276 = vcvt.s32.f32 %v244
          %v277 = vcvt.s32.f32 %v245
          %v278 = vcvt.s32.f32 %v246
          %v279 = vcvt.s32.f32 %v247
          %v280 = vcvt.s32.f32 %v248
          %v281 = vcvt.s32.f32 %v249
          %v282 = vcvt.s32.f32 %v250
          %v283 = vcvt.s32.f32 %v251
          %v284 = vcvt.s32.f32 %v252
          %v285 = vcvt.s32.f32 %v253
          %v286 = vcvt.s32.f32 %v254
          %v287 = vcvt.s32.f32 %v255
          %v288 = vcvt.s32.f32 %v256
          %v289 = vcvt.s32.f32 %v257
          %v290 = vcvt.s32.f32 %v258
          %v291 = vcvt.s32.f32 %v259
          %v292 = vcvt.s32.f32 %v260
          %v293 = vcvt.s32.f32 %v261
          %v294 = vcvt.s32.f32 %v262
          %v295 = vcvt.s32.f32 %v263
          %v296 = vcvt.s32.f32 %v264
          %v297 = vcvt.s32.f32 %v265
          %v298 = vcvt.s32.f32 %v266
          %v299 = vcvt.s32.f32 %v267
          %v300 = vcvt.s32.f32 %v268
          %v301 = vcvt.s32.f32 %v269
          %v302 = vadd.f32 %v270, 0.5
          %v303 = vadd.f32 %v271, 0.5
          %v304 = vadd.f32 %v272, 0.5
          %v305 = vadd.f32 %v273, 0.5
          %v306 = vadd.f32 %v274, 0.5
          %v307 = vadd.f32 %v275, 0.5
          %v308 = vadd.f32 %v276, 0.5
          %v309 = vadd.f32 %v277, 0.5
          %v310 = vadd.f32 %v278, 0.5
          %v311 = vadd.f32 %v279, 0.5
          %v312 = vadd.f32 %v280, 0.5
          %v313 = vadd.f32 %v281, 0.5
          %v314 = vadd.f32 %v282, 0.5
          %v315 = vadd.f32 %v283, 0.5
          %v316 = vadd.f32 %v284, 0.5
          %v317 = vadd.f32 %v285, 0.5
          %v318 = vadd.f32 %v286, 0.5
          %v319 = vadd.f32 %v287, 0.5
          %v320 = vadd.f32 %v288, 0.5
          %v321 = vadd.f32 %v289, 0.5
          %v322 = vadd.f32 %v290, 0.5
          %v323 = vadd.f32 %v291, 0.5
          %v324 = vadd.f32 %v292, 0.5
          %v325 = vadd.f32 %v293, 0.5
          %v326 = vadd.f32 %v294, 0.5
          %v327 = vadd.f32 %v295, 0.5
          %v328 = vadd.f32 %v296, 0.5
          %v329 = vadd.f32 %v297, 0.5
          %v330 = vadd.f32 %v298, 0.5
          %v331 = vadd.f32 %v299, 0.5
          %v332 = vadd.f32 %v300, 0.5
          %v333 = vadd.f32 %v301, 0.5
          %v334 = vmul.f32 %v302, 0.0625
          %v335 = vmul.f32 %v303, 0.0625
          %v336 = vmul.f32 %v304, 0.0625
          %v337 = vmul.f32 %v305, 0.0625
          %v338 = vmul.f32 %v306, 0.0625
          %v339 = vmul.f32 %v307, 0.0625
          %v340 = vmul.f32 %v308, 0.0625
          %v341 = vmul.f32 %v309, 0.0625
          %v342 = vmul.f32 %v310, 0.0625
          %v343 = vmul.f32 %v311, 0.0625
          %v344 = vmul.f32 %v312, 0.0625
          %v345 = vmul.f32 %v313, 0.0625
          %v346 = vmul.f32 %v314, 0.0625
          %v347 = vmul.f32 %v315, 0.0625
          %v348 = vmul.f32 %v316, 0.0625
          %v349 = vmul.f32 %v317, 0.0625
          %v350 = vmul.f32 %v318, 0.0625
          %v351 = vmul.f32 %v319, 0.0625
          %v352 = vmul.f32 %v320, 0.0625
          %v353 = vmul.f32 %v321, 0.0625
          %v354 = vmul.f32 %v322, 0.0625
          %v355 = vmul.f32 %v323, 0.0625
          %v356 = vmul.f32 %v324, 0.0625
          %v357 = vmul.f32 %v325, 0.0625
          %v358 = vmul.f32 %v326, 0.0625
          %v359 = vmul.f32 %v327, 0.0625
          %v360 = vmul.f32 %v328, 0.0625
          %v361 = vmul.f32 %v329, 0.0625
          %v362 = vmul.f32 %v330, 0.0625
          %v363 = vmul.f32 %v331, 0.0625
          %v364 = vmul.f32 %v332, 0.0625
          %v365 = vmul.f32 %v333, 0.0625
          %v366 = vfloor.f32 %v334
          %v367 = vfloor.f32 %v335
          %v368 = vfloor.f32 %v336
          %v369 = vfloor.f32 %v337
          %v370 = vfloor.f32 %v338
          %v371 = vfloor.f32 %v339
          %v372 = vfloor.f32 %v340
          %v373 = vfloor.f32 %v341
          %v374 = vfloor.f32 %v342
          %v375 = vfloor.f32 %v343
          %v376 = vfloor.f32 %v344
          %v377 = vfloor.f32 %v345
          %v378 = vfloor.f32 %v346
          %v379 = vfloor.f32 %v347
          %v380 = vfloor.f32 %v348
          %v381 = vfloor.f32 %v349
          %v382 = vfloor.f32 %v350
          %v383 = vfloor.f32 %v351
          %v384 = vfloor.f32 %v352
          %v385 = vfloor.f32 %v353
          %v386 = vfloor.f32 %v354
          %v387 = vfloor.f32 %v355
          %v388 = vfloor.f32 %v356
          %v389 = vfloor.f32 %v357
          %v390 = vfloor.f32 %v358
          %v391 = vfloor.f32 %v359
          %v392 = vfloor.f32 %v360
          %v393 = vfloor.f32 %v361
          %v394 = vfloor.f32 %v362
          %v395 = vfloor.f32 %v363
          %v396 = vfloor.f32 %v364
          %v397 = vfloor.f32 %v365
          %v398 = vmul.f32 %v366, 16.0
          %v399 = vmul.f32 %v367, 16.0
          %v400 = vmul.f32 %v368, 16.0
          %v401 = vmul.f32 %v369, 16.0
          %v402 = vmul.f32 %v370, 16.0
          %v403 = vmul.f32 %v371, 16.0
          %v404 = vmul.f32 %v372, 16.0
          %v405 = vmul.f32 %v373, 16.0
          %v406 = vmul.f32 %v374, 16.0
          %v407 = vmul.f32 %v375, 16.0
          %v408 = vmul.f32 %v376, 16.0
          %v409 = vmul.f32 %v377, 16.0
          %v410 = vmul.f32 %v378, 16.0
          %v411 = vmul.f32 %v379, 16.0
          %v412 = vmul.f32 %v380, 16.0
          %v413 = vmul.f32 %v381, 16.0
          %v414 = vmul.f32 %v382, 16.0
          %v415 = vmul.f32 %v383, 16.0
          %v416 = vmul.f32 %v384, 16.0
          %v417 = vmul.f32 %v385, 16.0
          %v418 = vmul.f32 %v386, 16.0
          %v419 = vmul.f32 %v387, 16.0
          %v420 = vmul.f32 %v388, 16.0
          %v421 = vmul.f32 %v389, 16.0
          %v422 = vmul.f32 %v390, 16.0
          %v423 = vmul.f32 %v391, 16.0
          %v424 = vmul.f32 %v392, 16.0
          %v425 = vmul.f32 %v393, 16.0
          %v426 = vmul.f32 %v394, 16.0
          %v427 = vmul.f32 %v395, 16.0
          %v428 = vmul.f32 %v396, 16.0
          %v429 = vmul.f32 %v397, 16.0
          %vm430 = vcmp.gt.f32.partialorder %v398, %v270
          %vm431 = vcmp.gt.f32.partialorder %v399, %v271
          %vm432 = vcmp.gt.f32.partialorder %v400, %v272
          %vm433 = vcmp.gt.f32.partialorder %v401, %v273
          %vm434 = vcmp.gt.f32.partialorder %v402, %v274
          %vm435 = vcmp.gt.f32.partialorder %v403, %v275
          %vm436 = vcmp.gt.f32.partialorder %v404, %v276
          %vm437 = vcmp.gt.f32.partialorder %v405, %v277
          %vm438 = vcmp.gt.f32.partialorder %v406, %v278
          %vm439 = vcmp.gt.f32.partialorder %v407, %v279
          %vm440 = vcmp.gt.f32.partialorder %v408, %v280
          %vm441 = vcmp.gt.f32.partialorder %v409, %v281
          %vm442 = vcmp.gt.f32.partialorder %v410, %v282
          %vm443 = vcmp.gt.f32.partialorder %v411, %v283
          %vm444 = vcmp.gt.f32.partialorder %v412, %v284
          %vm445 = vcmp.gt.f32.partialorder %v413, %v285
          %vm446 = vcmp.gt.f32.partialorder %v414, %v286
          %vm447 = vcmp.gt.f32.partialorder %v415, %v287
          %vm448 = vcmp.gt.f32.partialorder %v416, %v288
          %vm449 = vcmp.gt.f32.partialorder %v417, %v289
          %vm450 = vcmp.gt.f32.partialorder %v418, %v290
          %vm451 = vcmp.gt.f32.partialorder %v419, %v291
          %vm452 = vcmp.gt.f32.partialorder %v420, %v292
          %vm453 = vcmp.gt.f32.partialorder %v421, %v293
          %vm454 = vcmp.gt.f32.partialorder %v422, %v294
          %vm455 = vcmp.gt.f32.partialorder %v423, %v295
          %vm456 = vcmp.gt.f32.partialorder %v424, %v296
          %vm457 = vcmp.gt.f32.partialorder %v425, %v297
          %vm458 = vcmp.gt.f32.partialorder %v426, %v298
          %vm459 = vcmp.gt.f32.partialorder %v427, %v299
          %vm460 = vcmp.gt.f32.partialorder %v428, %v300
          %vm461 = vcmp.gt.f32.partialorder %v429, %v301
          %v462 = vsub.f32 %v366, 1.0
          %v463 = vsub.f32 %v367, 1.0
          %v464 = vsub.f32 %v368, 1.0
          %v465 = vsub.f32 %v369, 1.0
          %v466 = vsub.f32 %v370, 1.0
          %v467 = vsub.f32 %v371, 1.0
          %v468 = vsub.f32 %v372, 1.0
          %v469 = vsub.f32 %v373, 1.0
          %v470 = vsub.f32 %v374, 1.0
          %v471 = vsub.f32 %v375, 1.0
          %v472 = vsub.f32 %v376, 1.0
          %v473 = vsub.f32 %v377, 1.0
          %v474 = vsub.f32 %v378, 1.0
          %v475 = vsub.f32 %v379, 1.0
          %v476 = vsub.f32 %v380, 1.0
          %v477 = vsub.f32 %v381, 1.0
          %v478 = vsub.f32 %v382, 1.0
          %v479 = vsub.f32 %v383, 1.0
          %v480 = vsub.f32 %v384, 1.0
          %v481 = vsub.f32 %v385, 1.0
          %v482 = vsub.f32 %v386, 1.0
          %v483 = vsub.f32 %v387, 1.0
          %v484 = vsub.f32 %v388, 1.0
          %v485 = vsub.f32 %v389, 1.0
          %v486 = vsub.f32 %v390, 1.0
          %v487 = vsub.f32 %v391, 1.0
          %v488 = vsub.f32 %v392, 1.0
          %v489 = vsub.f32 %v393, 1.0
          %v490 = vsub.f32 %v394, 1.0
          %v491 = vsub.f32 %v395, 1.0
          %v492 = vsub.f32 %v396, 1.0
          %v493 = vsub.f32 %v397, 1.0
          %v494 = vsel %vm430, %v462, %v366
          %v495 = vsel %vm431, %v463, %v367
          %v496 = vsel %vm432, %v464, %v368
          %v497 = vsel %vm433, %v465, %v369
          %v498 = vsel %vm434, %v466, %v370
          %v499 = vsel %vm435, %v467, %v371
          %v500 = vsel %vm436, %v468, %v372
          %v501 = vsel %vm437, %v469, %v373
          %v502 = vsel %vm438, %v470, %v374
          %v503 = vsel %vm439, %v471, %v375
          %v504 = vsel %vm440, %v472, %v376
          %v505 = vsel %vm441, %v473, %v377
          %v506 = vsel %vm442, %v474, %v378
          %v507 = vsel %vm443, %v475, %v379
          %v508 = vsel %vm444, %v476, %v380
          %v509 = vsel %vm445, %v477, %v381
          %v510 = vsel %vm446, %v478, %v382
          %v511 = vsel %vm447, %v479, %v383
          %v512 = vsel %vm448, %v480, %v384
          %v513 = vsel %vm449, %v481, %v385
          %v514 = vsel %vm450, %v482, %v386
          %v515 = vsel %vm451, %v483, %v387
          %v516 = vsel %vm452, %v484, %v388
          %v517 = vsel %vm453, %v485, %v389
          %v518 = vsel %vm454, %v486, %v390
          %v519 = vsel %vm455, %v487, %v391
          %v520 = vsel %vm456, %v488, %v392
          %v521 = vsel %vm457, %v489, %v393
          %v522 = vsel %vm458, %v490, %v394
          %v523 = vsel %vm459, %v491, %v395
          %v524 = vsel %vm460, %v492, %v396
          %v525 = vsel %vm461, %v493, %v397
          %v526 = vadd.f32 %v494, 1.0
          %v527 = vadd.f32 %v495, 1.0
          %v528 = vadd.f32 %v496, 1.0
          %v529 = vadd.f32 %v497, 1.0
          %v530 = vadd.f32 %v498, 1.0
          %v531 = vadd.f32 %v499, 1.0
          %v532 = vadd.f32 %v500, 1.0
          %v533 = vadd.f32 %v501, 1.0
          %v534 = vadd.f32 %v502, 1.0
          %v535 = vadd.f32 %v503, 1.0
          %v536 = vadd.f32 %v504, 1.0
          %v537 = vadd.f32 %v505, 1.0
          %v538 = vadd.f32 %v506, 1.0
          %v539 = vadd.f32 %v507, 1.0
          %v540 = vadd.f32 %v508, 1.0
          %v541 = vadd.f32 %v509, 1.0
          %v542 = vadd.f32 %v510, 1.0
          %v543 = vadd.f32 %v511, 1.0
          %v544 = vadd.f32 %v512, 1.0
          %v545 = vadd.f32 %v513, 1.0
          %v546 = vadd.f32 %v514, 1.0
          %v547 = vadd.f32 %v515, 1.0
          %v548 = vadd.f32 %v516, 1.0
          %v549 = vadd.f32 %v517, 1.0
          %v550 = vadd.f32 %v518, 1.0
          %v551 = vadd.f32 %v519, 1.0
          %v552 = vadd.f32 %v520, 1.0
          %v553 = vadd.f32 %v521, 1.0
          %v554 = vadd.f32 %v522, 1.0
          %v555 = vadd.f32 %v523, 1.0
          %v556 = vadd.f32 %v524, 1.0
          %v557 = vadd.f32 %v525, 1.0
          %v558 = vmul.f32 %v526, 16.0
          %v559 = vmul.f32 %v527, 16.0
          %v560 = vmul.f32 %v528, 16.0
          %v561 = vmul.f32 %v529, 16.0
          %v562 = vmul.f32 %v530, 16.0
          %v563 = vmul.f32 %v531, 16.0
          %v564 = vmul.f32 %v532, 16.0
          %v565 = vmul.f32 %v533, 16.0
          %v566 = vmul.f32 %v534, 16.0
          %v567 = vmul.f32 %v535, 16.0
          %v568 = vmul.f32 %v536, 16.0
          %v569 = vmul.f32 %v537, 16.0
          %v570 = vmul.f32 %v538, 16.0
          %v571 = vmul.f32 %v539, 16.0
          %v572 = vmul.f32 %v540, 16.0
          %v573 = vmul.f32 %v541, 16.0
          %v574 = vmul.f32 %v542, 16.0
          %v575 = vmul.f32 %v543, 16.0
          %v576 = vmul.f32 %v544, 16.0
          %v577 = vmul.f32 %v545, 16.0
          %v578 = vmul.f32 %v546, 16.0
          %v579 = vmul.f32 %v547, 16.0
          %v580 = vmul.f32 %v548, 16.0
          %v581 = vmul.f32 %v549, 16.0
          %v582 = vmul.f32 %v550, 16.0
          %v583 = vmul.f32 %v551, 16.0
          %v584 = vmul.f32 %v552, 16.0
          %v585 = vmul.f32 %v553, 16.0
          %v586 = vmul.f32 %v554, 16.0
          %v587 = vmul.f32 %v555, 16.0
          %v588 = vmul.f32 %v556, 16.0
          %v589 = vmul.f32 %v557, 16.0
          %vm590 = vcmp.le.f32.partialorder %v558, %v270
          %vm591 = vcmp.le.f32.partialorder %v559, %v271
          %vm592 = vcmp.le.f32.partialorder %v560, %v272
          %vm593 = vcmp.le.f32.partialorder %v561, %v273
          %vm594 = vcmp.le.f32.partialorder %v562, %v274
          %vm595 = vcmp.le.f32.partialorder %v563, %v275
          %vm596 = vcmp.le.f32.partialorder %v564, %v276
          %vm597 = vcmp.le.f32.partialorder %v565, %v277
          %vm598 = vcmp.le.f32.partialorder %v566, %v278
          %vm599 = vcmp.le.f32.partialorder %v567, %v279
          %vm600 = vcmp.le.f32.partialorder %v568, %v280
          %vm601 = vcmp.le.f32.partialorder %v569, %v281
          %vm602 = vcmp.le.f32.partialorder %v570, %v282
          %vm603 = vcmp.le.f32.partialorder %v571, %v283
          %vm604 = vcmp.le.f32.partialorder %v572, %v284
          %vm605 = vcmp.le.f32.partialorder %v573, %v285
          %vm606 = vcmp.le.f32.partialorder %v574, %v286
          %vm607 = vcmp.le.f32.partialorder %v575, %v287
          %vm608 = vcmp.le.f32.partialorder %v576, %v288
          %vm609 = vcmp.le.f32.partialorder %v577, %v289
          %vm610 = vcmp.le.f32.partialorder %v578, %v290
          %vm611 = vcmp.le.f32.partialorder %v579, %v291
          %vm612 = vcmp.le.f32.partialorder %v580, %v292
          %vm613 = vcmp.le.f32.partialorder %v581, %v293
          %vm614 = vcmp.le.f32.partialorder %v582, %v294
          %vm615 = vcmp.le.f32.partialorder %v583, %v295
          %vm616 = vcmp.le.f32.partialorder %v584, %v296
          %vm617 = vcmp.le.f32.partialorder %v585, %v297
          %vm618 = vcmp.le.f32.partialorder %v586, %v298
          %vm619 = vcmp.le.f32.partialorder %v587, %v299
          %vm620 = vcmp.le.f32.partialorder %v588, %v300
          %vm621 = vcmp.le.f32.partialorder %v589, %v301
          %v622 = vsel %vm590, %v526, %v494
          %v623 = vsel %vm591, %v527, %v495
          %v624 = vsel %vm592, %v528, %v496
          %v625 = vsel %vm593, %v529, %v497
          %v626 = vsel %vm594, %v530, %v498
          %v627 = vsel %vm595, %v531, %v499
          %v628 = vsel %vm596, %v532, %v500
          %v629 = vsel %vm597, %v533, %v501
          %v630 = vsel %vm598, %v534, %v502
          %v631 = vsel %vm599, %v535, %v503
          %v632 = vsel %vm600, %v536, %v504
          %v633 = vsel %vm601, %v537, %v505
          %v634 = vsel %vm602, %v538, %v506
          %v635 = vsel %vm603, %v539, %v507
          %v636 = vsel %vm604, %v540, %v508
          %v637 = vsel %vm605, %v541, %v509
          %v638 = vsel %vm606, %v542, %v510
          %v639 = vsel %vm607, %v543, %v511
          %v640 = vsel %vm608, %v544, %v512
          %v641 = vsel %vm609, %v545, %v513
          %v642 = vsel %vm610, %v546, %v514
          %v643 = vsel %vm611, %v547, %v515
          %v644 = vsel %vm612, %v548, %v516
          %v645 = vsel %vm613, %v549, %v517
          %v646 = vsel %vm614, %v550, %v518
          %v647 = vsel %vm615, %v551, %v519
          %v648 = vsel %vm616, %v552, %v520
          %v649 = vsel %vm617, %v553, %v521
          %v650 = vsel %vm618, %v554, %v522
          %v651 = vsel %vm619, %v555, %v523
          %v652 = vsel %vm620, %v556, %v524
          %v653 = vsel %vm621, %v557, %v525
          %v654 = vmul.f32 %v622, 16.0
          %v655 = vmul.f32 %v623, 16.0
          %v656 = vmul.f32 %v624, 16.0
          %v657 = vmul.f32 %v625, 16.0
          %v658 = vmul.f32 %v626, 16.0
          %v659 = vmul.f32 %v627, 16.0
          %v660 = vmul.f32 %v628, 16.0
          %v661 = vmul.f32 %v629, 16.0
          %v662 = vmul.f32 %v630, 16.0
          %v663 = vmul.f32 %v631, 16.0
          %v664 = vmul.f32 %v632, 16.0
          %v665 = vmul.f32 %v633, 16.0
          %v666 = vmul.f32 %v634, 16.0
          %v667 = vmul.f32 %v635, 16.0
          %v668 = vmul.f32 %v636, 16.0
          %v669 = vmul.f32 %v637, 16.0
          %v670 = vmul.f32 %v638, 16.0
          %v671 = vmul.f32 %v639, 16.0
          %v672 = vmul.f32 %v640, 16.0
          %v673 = vmul.f32 %v641, 16.0
          %v674 = vmul.f32 %v642, 16.0
          %v675 = vmul.f32 %v643, 16.0
          %v676 = vmul.f32 %v644, 16.0
          %v677 = vmul.f32 %v645, 16.0
          %v678 = vmul.f32 %v646, 16.0
          %v679 = vmul.f32 %v647, 16.0
          %v680 = vmul.f32 %v648, 16.0
          %v681 = vmul.f32 %v649, 16.0
          %v682 = vmul.f32 %v650, 16.0
          %v683 = vmul.f32 %v651, 16.0
          %v684 = vmul.f32 %v652, 16.0
          %v685 = vmul.f32 %v653, 16.0
          %v686 = vsub.f32 %v270, %v654
          %v687 = vsub.f32 %v271, %v655
          %v688 = vsub.f32 %v272, %v656
          %v689 = vsub.f32 %v273, %v657
          %v690 = vsub.f32 %v274, %v658
          %v691 = vsub.f32 %v275, %v659
          %v692 = vsub.f32 %v276, %v660
          %v693 = vsub.f32 %v277, %v661
          %v694 = vsub.f32 %v278, %v662
          %v695 = vsub.f32 %v279, %v663
          %v696 = vsub.f32 %v280, %v664
          %v697 = vsub.f32 %v281, %v665
          %v698 = vsub.f32 %v282, %v666
          %v699 = vsub.f32 %v283, %v667
          %v700 = vsub.f32 %v284, %v668
          %v701 = vsub.f32 %v285, %v669
          %v702 = vsub.f32 %v286, %v670
          %v703 = vsub.f32 %v287, %v671
          %v704 = vsub.f32 %v288, %v672
          %v705 = vsub.f32 %v289, %v673
          %v706 = vsub.f32 %v290, %v674
          %v707 = vsub.f32 %v291, %v675
          %v708 = vsub.f32 %v292, %v676
          %v709 = vsub.f32 %v293, %v677
          %v710 = vsub.f32 %v294, %v678
          %v711 = vsub.f32 %v295, %v679
          %v712 = vsub.f32 %v296, %v680
          %v713 = vsub.f32 %v297, %v681
          %v714 = vsub.f32 %v298, %v682
          %v715 = vsub.f32 %v299, %v683
          %v716 = vsub.f32 %v300, %v684
          %v717 = vsub.f32 %v301, %v685
          %v718 = vlaneseq
          %v719 = vshrl.u32 %v718, 7
          %v720 = vsub.s32 1, %v719
          %v721 = vrot.slane %v236, %v720
          %v722 = vsub.f32 %v622, %v721
          %v723 = vsub.f32 %v623, %v721
          %v724 = vsub.f32 %v624, %v721
          %v725 = vsub.f32 %v625, %v721
          %v726 = vsub.f32 %v626, %v721
          %v727 = vsub.f32 %v627, %v721
          %v728 = vsub.f32 %v628, %v721
          %v729 = vsub.f32 %v629, %v721
          %v730 = vsub.f32 %v630, %v721
          %v731 = vsub.f32 %v631, %v721
          %v732 = vsub.f32 %v632, %v721
          %v733 = vsub.f32 %v633, %v721
          %v734 = vsub.f32 %v634, %v721
          %v735 = vsub.f32 %v635, %v721
          %v736 = vsub.f32 %v636, %v721
          %v737 = vsub.f32 %v637, %v721
          %v738 = vsub.f32 %v638, %v721
          %v739 = vsub.f32 %v639, %v721
          %v740 = vsub.f32 %v640, %v721
          %v741 = vsub.f32 %v641, %v721
          %v742 = vsub.f32 %v642, %v721
          %v743 = vsub.f32 %v643, %v721
          %v744 = vsub.f32 %v644, %v721
          %v745 = vsub.f32 %v645, %v721
          %v746 = vsub.f32 %v646, %v721
          %v747 = vsub.f32 %v647, %v721
          %v748 = vsub.f32 %v648, %v721
          %v749 = vsub.f32 %v649, %v721
          %v750 = vsub.f32 %v650, %v721
          %v751 = vsub.f32 %v651, %v721
          %v752 = vsub.f32 %v652, %v721
          %v753 = vsub.f32 %v653, %v721
          %v754 = vand.u32 2147483647, %v722
          %v755 = vand.u32 2147483647, %v723
          %v756 = vand.u32 2147483647, %v724
          %v757 = vand.u32 2147483647, %v725
          %v758 = vand.u32 2147483647, %v726
          %v759 = vand.u32 2147483647, %v727
          %v760 = vand.u32 2147483647, %v728
          %v761 = vand.u32 2147483647, %v729
          %v762 = vand.u32 2147483647, %v730
          %v763 = vand.u32 2147483647, %v731
          %v764 = vand.u32 2147483647, %v732
          %v765 = vand.u32 2147483647, %v733
          %v766 = vand.u32 2147483647, %v734
          %v767 = vand.u32 2147483647, %v735
          %v768 = vand.u32 2147483647, %v736
          %v769 = vand.u32 2147483647, %v737
          %v770 = vand.u32 2147483647, %v738
          %v771 = vand.u32 2147483647, %v739
          %v772 = vand.u32 2147483647, %v740
          %v773 = vand.u32 2147483647, %v741
          %v774 = vand.u32 2147483647, %v742
          %v775 = vand.u32 2147483647, %v743
          %v776 = vand.u32 2147483647, %v744
          %v777 = vand.u32 2147483647, %v745
          %v778 = vand.u32 2147483647, %v746
          %v779 = vand.u32 2147483647, %v747
          %v780 = vand.u32 2147483647, %v748
          %v781 = vand.u32 2147483647, %v749
          %v782 = vand.u32 2147483647, %v750
          %v783 = vand.u32 2147483647, %v751
          %v784 = vand.u32 2147483647, %v752
          %v785 = vand.u32 2147483647, %v753
          %v786 = vsub.f32 1.0, %v754
          %v787 = vsub.f32 1.0, %v755
          %v788 = vsub.f32 1.0, %v756
          %v789 = vsub.f32 1.0, %v757
          %v790 = vsub.f32 1.0, %v758
          %v791 = vsub.f32 1.0, %v759
          %v792 = vsub.f32 1.0, %v760
          %v793 = vsub.f32 1.0, %v761
          %v794 = vsub.f32 1.0, %v762
          %v795 = vsub.f32 1.0, %v763
          %v796 = vsub.f32 1.0, %v764
          %v797 = vsub.f32 1.0, %v765
          %v798 = vsub.f32 1.0, %v766
          %v799 = vsub.f32 1.0, %v767
          %v800 = vsub.f32 1.0, %v768
          %v801 = vsub.f32 1.0, %v769
          %v802 = vsub.f32 1.0, %v770
          %v803 = vsub.f32 1.0, %v771
          %v804 = vsub.f32 1.0, %v772
          %v805 = vsub.f32 1.0, %v773
          %v806 = vsub.f32 1.0, %v774
          %v807 = vsub.f32 1.0, %v775
          %v808 = vsub.f32 1.0, %v776
          %v809 = vsub.f32 1.0, %v777
          %v810 = vsub.f32 1.0, %v778
          %v811 = vsub.f32 1.0, %v779
          %v812 = vsub.f32 1.0, %v780
          %v813 = vsub.f32 1.0, %v781
          %v814 = vsub.f32 1.0, %v782
          %v815 = vsub.f32 1.0, %v783
          %v816 = vsub.f32 1.0, %v784
          %v817 = vsub.f32 1.0, %v785
          %v818 = vmax.f32 %v786, 0.0
          %v819 = vmax.f32 %v787, 0.0
          %v820 = vmax.f32 %v788, 0.0
          %v821 = vmax.f32 %v789, 0.0
          %v822 = vmax.f32 %v790, 0.0
          %v823 = vmax.f32 %v791, 0.0
          %v824 = vmax.f32 %v792, 0.0
          %v825 = vmax.f32 %v793, 0.0
          %v826 = vmax.f32 %v794, 0.0
          %v827 = vmax.f32 %v795, 0.0
          %v828 = vmax.f32 %v796, 0.0
          %v829 = vmax.f32 %v797, 0.0
          %v830 = vmax.f32 %v798, 0.0
          %v831 = vmax.f32 %v799, 0.0
          %v832 = vmax.f32 %v800, 0.0
          %v833 = vmax.f32 %v801, 0.0
          %v834 = vmax.f32 %v802, 0.0
          %v835 = vmax.f32 %v803, 0.0
          %v836 = vmax.f32 %v804, 0.0
          %v837 = vmax.f32 %v805, 0.0
          %v838 = vmax.f32 %v806, 0.0
          %v839 = vmax.f32 %v807, 0.0
          %v840 = vmax.f32 %v808, 0.0
          %v841 = vmax.f32 %v809, 0.0
          %v842 = vmax.f32 %v810, 0.0
          %v843 = vmax.f32 %v811, 0.0
          %v844 = vmax.f32 %v812, 0.0
          %v845 = vmax.f32 %v813, 0.0
          %v846 = vmax.f32 %v814, 0.0
          %v847 = vmax.f32 %v815, 0.0
          %v848 = vmax.f32 %v816, 0.0
          %v849 = vmax.f32 %v817, 0.0
          %v850 = vlaneseq
          %v851 = vshrl.u32 %v850, 7
          %v852 = vsub.s32 0, %v851
          %v853 = vrot.slane %v236, %v852
          %v854 = vsub.f32 %v686, %v853
          %v855 = vsub.f32 %v687, %v853
          %v856 = vsub.f32 %v688, %v853
          %v857 = vsub.f32 %v689, %v853
          %v858 = vsub.f32 %v690, %v853
          %v859 = vsub.f32 %v691, %v853
          %v860 = vsub.f32 %v692, %v853
          %v861 = vsub.f32 %v693, %v853
          %v862 = vsub.f32 %v694, %v853
          %v863 = vsub.f32 %v695, %v853
          %v864 = vsub.f32 %v696, %v853
          %v865 = vsub.f32 %v697, %v853
          %v866 = vsub.f32 %v698, %v853
          %v867 = vsub.f32 %v699, %v853
          %v868 = vsub.f32 %v700, %v853
          %v869 = vsub.f32 %v701, %v853
          %v870 = vsub.f32 %v702, %v853
          %v871 = vsub.f32 %v703, %v853
          %v872 = vsub.f32 %v704, %v853
          %v873 = vsub.f32 %v705, %v853
          %v874 = vsub.f32 %v706, %v853
          %v875 = vsub.f32 %v707, %v853
          %v876 = vsub.f32 %v708, %v853
          %v877 = vsub.f32 %v709, %v853
          %v878 = vsub.f32 %v710, %v853
          %v879 = vsub.f32 %v711, %v853
          %v880 = vsub.f32 %v712, %v853
          %v881 = vsub.f32 %v713, %v853
          %v882 = vsub.f32 %v714, %v853
          %v883 = vsub.f32 %v715, %v853
          %v884 = vsub.f32 %v716, %v853
          %v885 = vsub.f32 %v717, %v853
          %v886 = vand.u32 2147483647, %v854
          %v887 = vand.u32 2147483647, %v855
          %v888 = vand.u32 2147483647, %v856
          %v889 = vand.u32 2147483647, %v857
          %v890 = vand.u32 2147483647, %v858
          %v891 = vand.u32 2147483647, %v859
          %v892 = vand.u32 2147483647, %v860
          %v893 = vand.u32 2147483647, %v861
          %v894 = vand.u32 2147483647, %v862
          %v895 = vand.u32 2147483647, %v863
          %v896 = vand.u32 2147483647, %v864
          %v897 = vand.u32 2147483647, %v865
          %v898 = vand.u32 2147483647, %v866
          %v899 = vand.u32 2147483647, %v867
          %v900 = vand.u32 2147483647, %v868
          %v901 = vand.u32 2147483647, %v869
          %v902 = vand.u32 2147483647, %v870
          %v903 = vand.u32 2147483647, %v871
          %v904 = vand.u32 2147483647, %v872
          %v905 = vand.u32 2147483647, %v873
          %v906 = vand.u32 2147483647, %v874
          %v907 = vand.u32 2147483647, %v875
          %v908 = vand.u32 2147483647, %v876
          %v909 = vand.u32 2147483647, %v877
          %v910 = vand.u32 2147483647, %v878
          %v911 = vand.u32 2147483647, %v879
          %v912 = vand.u32 2147483647, %v880
          %v913 = vand.u32 2147483647, %v881
          %v914 = vand.u32 2147483647, %v882
          %v915 = vand.u32 2147483647, %v883
          %v916 = vand.u32 2147483647, %v884
          %v917 = vand.u32 2147483647, %v885
          %v918 = vsub.f32 1.0, %v886
          %v919 = vsub.f32 1.0, %v887
          %v920 = vsub.f32 1.0, %v888
          %v921 = vsub.f32 1.0, %v889
          %v922 = vsub.f32 1.0, %v890
          %v923 = vsub.f32 1.0, %v891
          %v924 = vsub.f32 1.0, %v892
          %v925 = vsub.f32 1.0, %v893
          %v926 = vsub.f32 1.0, %v894
          %v927 = vsub.f32 1.0, %v895
          %v928 = vsub.f32 1.0, %v896
          %v929 = vsub.f32 1.0, %v897
          %v930 = vsub.f32 1.0, %v898
          %v931 = vsub.f32 1.0, %v899
          %v932 = vsub.f32 1.0, %v900
          %v933 = vsub.f32 1.0, %v901
          %v934 = vsub.f32 1.0, %v902
          %v935 = vsub.f32 1.0, %v903
          %v936 = vsub.f32 1.0, %v904
          %v937 = vsub.f32 1.0, %v905
          %v938 = vsub.f32 1.0, %v906
          %v939 = vsub.f32 1.0, %v907
          %v940 = vsub.f32 1.0, %v908
          %v941 = vsub.f32 1.0, %v909
          %v942 = vsub.f32 1.0, %v910
          %v943 = vsub.f32 1.0, %v911
          %v944 = vsub.f32 1.0, %v912
          %v945 = vsub.f32 1.0, %v913
          %v946 = vsub.f32 1.0, %v914
          %v947 = vsub.f32 1.0, %v915
          %v948 = vsub.f32 1.0, %v916
          %v949 = vsub.f32 1.0, %v917
          %v950 = vmax.f32 %v918, 0.0
          %v951 = vmax.f32 %v919, 0.0
          %v952 = vmax.f32 %v920, 0.0
          %v953 = vmax.f32 %v921, 0.0
          %v954 = vmax.f32 %v922, 0.0
          %v955 = vmax.f32 %v923, 0.0
          %v956 = vmax.f32 %v924, 0.0
          %v957 = vmax.f32 %v925, 0.0
          %v958 = vmax.f32 %v926, 0.0
          %v959 = vmax.f32 %v927, 0.0
          %v960 = vmax.f32 %v928, 0.0
          %v961 = vmax.f32 %v929, 0.0
          %v962 = vmax.f32 %v930, 0.0
          %v963 = vmax.f32 %v931, 0.0
          %v964 = vmax.f32 %v932, 0.0
          %v965 = vmax.f32 %v933, 0.0
          %v966 = vmax.f32 %v934, 0.0
          %v967 = vmax.f32 %v935, 0.0
          %v968 = vmax.f32 %v936, 0.0
          %v969 = vmax.f32 %v937, 0.0
          %v970 = vmax.f32 %v938, 0.0
          %v971 = vmax.f32 %v939, 0.0
          %v972 = vmax.f32 %v940, 0.0
          %v973 = vmax.f32 %v941, 0.0
          %v974 = vmax.f32 %v942, 0.0
          %v975 = vmax.f32 %v943, 0.0
          %v976 = vmax.f32 %v944, 0.0
          %v977 = vmax.f32 %v945, 0.0
          %v978 = vmax.f32 %v946, 0.0
          %v979 = vmax.f32 %v947, 0.0
          %v980 = vmax.f32 %v948, 0.0
          %v981 = vmax.f32 %v949, 0.0
          %v982 = vmul.f32 %v818, %v950
          %v983 = vmul.f32 %v819, %v951
          %v984 = vmul.f32 %v820, %v952
          %v985 = vmul.f32 %v821, %v953
          %v986 = vmul.f32 %v822, %v954
          %v987 = vmul.f32 %v823, %v955
          %v988 = vmul.f32 %v824, %v956
          %v989 = vmul.f32 %v825, %v957
          %v990 = vmul.f32 %v826, %v958
          %v991 = vmul.f32 %v827, %v959
          %v992 = vmul.f32 %v828, %v960
          %v993 = vmul.f32 %v829, %v961
          %v994 = vmul.f32 %v830, %v962
          %v995 = vmul.f32 %v831, %v963
          %v996 = vmul.f32 %v832, %v964
          %v997 = vmul.f32 %v833, %v965
          %v998 = vmul.f32 %v834, %v966
          %v999 = vmul.f32 %v835, %v967
          %v1000 = vmul.f32 %v836, %v968
          %v1001 = vmul.f32 %v837, %v969
          %v1002 = vmul.f32 %v838, %v970
          %v1003 = vmul.f32 %v839, %v971
          %v1004 = vmul.f32 %v840, %v972
          %v1005 = vmul.f32 %v841, %v973
          %v1006 = vmul.f32 %v842, %v974
          %v1007 = vmul.f32 %v843, %v975
          %v1008 = vmul.f32 %v844, %v976
          %v1009 = vmul.f32 %v845, %v977
          %v1010 = vmul.f32 %v846, %v978
          %v1011 = vmul.f32 %v847, %v979
          %v1012 = vmul.f32 %v848, %v980
          %v1013 = vmul.f32 %v849, %v981
          %vm1014 = vcmask 64512
          %1015 = vst.msk [vmem:[#allocation2] sm:$0xff] %vm1014, %v982
          %1016 = vst.msk [vmem:[#allocation2 + $0x8] sm:$0xff] %vm1014, %v983
          %1017 = vst.msk [vmem:[#allocation2 + $0x10] sm:$0xff] %vm1014, %v984
          %1018 = vst.msk [vmem:[#allocation2 + $0x18] sm:$0xff] %vm1014, %v985
          %1019 = vst.msk [vmem:[#allocation2 + $0x20] sm:$0xff] %vm1014, %v986
          %1020 = vst.msk [vmem:[#allocation2 + $0x28] sm:$0xff] %vm1014, %v987
          %1021 = vst.msk [vmem:[#allocation2 + $0x30] sm:$0xff] %vm1014, %v988
          %1022 = vst.msk [vmem:[#allocation2 + $0x38] sm:$0xff] %vm1014, %v989
          %1023 = vst.msk [vmem:[#allocation2 + $0x40] sm:$0xff] %vm1014, %v990
          %1024 = vst.msk [vmem:[#allocation2 + $0x48] sm:$0xff] %vm1014, %v991
          %1025 = vst.msk [vmem:[#allocation2 + $0x50] sm:$0xff] %vm1014, %v992
          %1026 = vst.msk [vmem:[#allocation2 + $0x58] sm:$0xff] %vm1014, %v993
          %1027 = vst.msk [vmem:[#allocation2 + $0x60] sm:$0xff] %vm1014, %v994
          %1028 = vst.msk [vmem:[#allocation2 + $0x68] sm:$0xff] %vm1014, %v995
          %1029 = vst.msk [vmem:[#allocation2 + $0x70] sm:$0xff] %vm1014, %v996
          %1030 = vst.msk [vmem:[#allocation2 + $0x78] sm:$0xff] %vm1014, %v997
          %1031 = vst.msk [vmem:[#allocation2 + $0x80] sm:$0xff] %vm1014, %v998
          %1032 = vst.msk [vmem:[#allocation2 + $0x88] sm:$0xff] %vm1014, %v999
          %1033 = vst.msk [vmem:[#allocation2 + $0x90] sm:$0xff] %vm1014, %v1000
          %1034 = vst.msk [vmem:[#allocation2 + $0x98] sm:$0xff] %vm1014, %v1001
          %1035 = vst.msk [vmem:[#allocation2 + $0xa0] sm:$0xff] %vm1014, %v1002
          %1036 = vst.msk [vmem:[#allocation2 + $0xa8] sm:$0xff] %vm1014, %v1003
          %1037 = vst.msk [vmem:[#allocation2 + $0xb0] sm:$0xff] %vm1014, %v1004
          %1038 = vst.msk [vmem:[#allocation2 + $0xb8] sm:$0xff] %vm1014, %v1005
          %1039 = vst.msk [vmem:[#allocation2 + $0xc0] sm:$0xff] %vm1014, %v1006
          %1040 = vst.msk [vmem:[#allocation2 + $0xc8] sm:$0xff] %vm1014, %v1007
          %1041 = vst.msk [vmem:[#allocation2 + $0xd0] sm:$0xff] %vm1014, %v1008
          %1042 = vst.msk [vmem:[#allocation2 + $0xd8] sm:$0xff] %vm1014, %v1009
          %1043 = vst.msk [vmem:[#allocation2 + $0xe0] sm:$0xff] %vm1014, %v1010
          %1044 = vst.msk [vmem:[#allocation2 + $0xe8] sm:$0xff] %vm1014, %v1011
          %1045 = vst.msk [vmem:[#allocation2 + $0xf0] sm:$0xff] %vm1014, %v1012
          %1046 = vst.msk [vmem:[#allocation2 + $0xf8] sm:$0xff] %vm1014, %v1013
        $region40: #{tpu_custom_call.1} parent=27 // pred_fallthru
          _
        %v1047 = vld [vmem:[%s201] sm:$0xff]
        %v1048 = vld [vmem:[#allocation2] sm:$0xff]
        %v1049 = vld [vmem:[#allocation2 + $0x8] sm:$0xff]
        %v1050 = vld [vmem:[#allocation2 + $0x10] sm:$0xff]
        %v1051 = vld [vmem:[#allocation2 + $0x18] sm:$0xff]
        %v1052 = vld [vmem:[#allocation2 + $0x20] sm:$0xff]
        %v1053 = vld [vmem:[#allocation2 + $0x28] sm:$0xff]
        %v1054 = vld [vmem:[#allocation2 + $0x30] sm:$0xff]
        %v1055 = vld [vmem:[#allocation2 + $0x38] sm:$0xff]
        %v1056 = vld [vmem:[#allocation2 + $0x40] sm:$0xff]
        %v1057 = vld [vmem:[#allocation2 + $0x48] sm:$0xff]
        %v1058 = vld [vmem:[#allocation2 + $0x50] sm:$0xff]
        %v1059 = vld [vmem:[#allocation2 + $0x58] sm:$0xff]
        %v1060 = vld [vmem:[#allocation2 + $0x60] sm:$0xff]
        %v1061 = vld [vmem:[#allocation2 + $0x68] sm:$0xff]
        %v1062 = vld [vmem:[#allocation2 + $0x70] sm:$0xff]
        %v1063 = vld [vmem:[#allocation2 + $0x78] sm:$0xff]
        %v1064 = vld [vmem:[#allocation2 + $0x80] sm:$0xff]
        %v1065 = vld [vmem:[#allocation2 + $0x88] sm:$0xff]
        %v1066 = vld [vmem:[#allocation2 + $0x90] sm:$0xff]
        %v1067 = vld [vmem:[#allocation2 + $0x98] sm:$0xff]
        %v1068 = vld [vmem:[#allocation2 + $0xa0] sm:$0xff]
        %v1069 = vld [vmem:[#allocation2 + $0xa8] sm:$0xff]
        %v1070 = vld [vmem:[#allocation2 + $0xb0] sm:$0xff]
        %v1071 = vld [vmem:[#allocation2 + $0xb8] sm:$0xff]
        %v1072 = vld [vmem:[#allocation2 + $0xc0] sm:$0xff]
        %v1073 = vld [vmem:[#allocation2 + $0xc8] sm:$0xff]
        %v1074 = vld [vmem:[#allocation2 + $0xd0] sm:$0xff]
        %v1075 = vld [vmem:[#allocation2 + $0xd8] sm:$0xff]
        %v1076 = vld [vmem:[#allocation2 + $0xe0] sm:$0xff]
        %v1077 = vld [vmem:[#allocation2 + $0xe8] sm:$0xff]
        %v1078 = vld [vmem:[#allocation2 + $0xf0] sm:$0xff]
        %v1079 = vld [vmem:[#allocation2 + $0xf8] sm:$0xff]
        %v1081 = vcombine.high %v1047, %v1047
        %1083 = vmatprep.subr.mxu0 0.0
        %1084 = vmatpush1.msra.mxu0 %v1048
        %1085 = vmatprep.subr.mxu0 0.0
        %1086 = vmatpush1.msra.mxu0 %v1049
        %1087 = vmatprep.subr.mxu0 0.0
        %1088 = vmatpush1.msra.mxu0 %v1050
        %1089 = vmatprep.subr.mxu0 0.0
        %1090 = vmatpush1.msra.mxu0 %v1051
        %1091 = vmatprep.subr.mxu0 0.0
        %1092 = vmatpush1.msra.mxu0 %v1052
        %1093 = vmatprep.subr.mxu0 0.0
        %1094 = vmatpush1.msra.mxu0 %v1053
        %1095 = vmatprep.subr.mxu0 0.0
        %1096 = vmatpush1.msra.mxu0 %v1054
        %1097 = vmatprep.subr.mxu0 0.0
        %1098 = vmatpush1.msra.mxu0 %v1055
        %1099 = vmatprep.subr.mxu0 0.0
        %1100 = vmatpush1.msra.mxu0 %v1056
        %1101 = vmatprep.subr.mxu0 0.0
        %1102 = vmatpush1.msra.mxu0 %v1057
        %1103 = vmatprep.subr.mxu0 0.0
        %1104 = vmatpush1.msra.mxu0 %v1058
        %1105 = vmatprep.subr.mxu0 0.0
        %1106 = vmatpush1.msra.mxu0 %v1059
        %1107 = vmatprep.subr.mxu0 0.0
        %1108 = vmatpush1.msra.mxu0 %v1060
        %1109 = vmatprep.subr.mxu0 0.0
        %1110 = vmatpush1.msra.mxu0 %v1061
        %1111 = vmatprep.subr.mxu0 0.0
        %1112 = vmatpush1.msra.mxu0 %v1062
        %1113 = vmatprep.subr.mxu0 0.0
        %1114 = vmatpush1.msra.mxu0 %v1063
        %1115 = vmatprep.subr.mxu0 0.0
        %1116 = vmatpush1.msra.mxu0 %v1064
        %1117 = vmatprep.subr.mxu0 0.0
        %1118 = vmatpush1.msra.mxu0 %v1065
        %1119 = vmatprep.subr.mxu0 0.0
        %1120 = vmatpush1.msra.mxu0 %v1066
        %1121 = vmatprep.subr.mxu0 0.0
        %1122 = vmatpush1.msra.mxu0 %v1067
        %1123 = vmatprep.subr.mxu0 0.0
        %1124 = vmatpush1.msra.mxu0 %v1068
        %1125 = vmatprep.subr.mxu0 0.0
        %1126 = vmatpush1.msra.mxu0 %v1069
        %1127 = vmatprep.subr.mxu0 0.0
        %1128 = vmatpush1.msra.mxu0 %v1070
        %1129 = vmatprep.subr.mxu0 0.0
        %1130 = vmatpush1.msra.mxu0 %v1071
        %1131 = vmatprep.subr.mxu0 0.0
        %1132 = vmatpush1.msra.mxu0 %v1072
        %1133 = vmatprep.subr.mxu0 0.0
        %1134 = vmatpush1.msra.mxu0 %v1073
        %1135 = vmatprep.subr.mxu0 0.0
        %1136 = vmatpush1.msra.mxu0 %v1074
        %1137 = vmatprep.subr.mxu0 0.0
        %1138 = vmatpush1.msra.mxu0 %v1075
        %1139 = vmatprep.subr.mxu0 0.0
        %1140 = vmatpush1.msra.mxu0 %v1076
        %1141 = vmatprep.subr.mxu0 0.0
        %1142 = vmatpush1.msra.mxu0 %v1077
        %1143 = vmatprep.subr.mxu0 0.0
        %1144 = vmatpush1.msra.mxu0 %v1078
        %1145 = vmatprep.subr.mxu0 0.0
        %1146 = vmatpush1.msra.mxu0 %v1079
        %1147 = vmatprep.mubr.f32.mxu0 %v1081
        %1148 = vmatmul.mubr.f32.gmra.mrb[0].mxu0 %v1047
        %v1149 = vpop.f32.mrb[0].mxu0
        %v1150 = vadd.f32 0.0, %v1149
        %v1151 = vpop.f32.mrb[0].mxu0
        %1152 = vdwg.mxu0
        %vm1153 = vcmask 60416
        %1154 = vst.msk [vmem:[%s226] sm:$0xf] %vm1153, %v1150
        %s1155 = sand.u32 %s109, 1
        %s1156 = scalar_lea.sflag [#allocation5], %s1155
        %s1157 = sand.u32 %s109, 1
        %s1158 = smul.addr %s1157, 4
        %s1159 = scalar_lea.vmem [#allocation8], %s1158
        // Predicated region
        $region41: #{tpu_custom_call.1} parent=27 // pred_check
          %p1160 = pneg %p119
        $region42: #{tpu_custom_call.1} parent=27 // pred_check_branch
          %1162 = sbr.rel (%p1160) target = $region44
        $region43: #{tpu_custom_call.1} parent=27 // pred_region
          %s1163 = sadd.s32 %s28, %s29
          %s1165 = ssub.s32 64, 64
          %1166 = vsyncadd %s1156, %s1165
          %s1167 = sadd.s32 %s1163, %s27
          %s1168 = smul.addr %s1167, 64
          %s1169 = scalar_lea.hbm %s2, %s1168
          %s1171 = sshll.u32 %s1159, 4
          %s1172 = int_to_ptr.vmem [resolvable:$true] %s1171
          %1174 = dma.vmem_to_hbm [thread:$0]  %s1172, 64, %s1169, %s1156
        $region44: #{tpu_custom_call.1} parent=27 // pred_fallthru
          _
      $region28: #{tpu_custom_call.1} parent=5 // pred_fallthru
        _
      %p1175 = scmp.le.s32.totalorder 2, %s17
      // Predicated region
      $region45: #{tpu_custom_call.1} parent=5 // pred_check
        %p1176 = pneg %p1175
      $region46: #{tpu_custom_call.1} parent=5 // pred_check_branch
        %1178 = sbr.rel (%p1176) target = $region48
      $region47: #{tpu_custom_call.1} parent=5 // pred_region
        %s1179 = ssub.s32 %s17, 2
        // Predicated region
        $region49: #{tpu_custom_call.1} parent=47 // pred_check
          %p1180 = pneg %p125
        $region50: #{tpu_custom_call.1} parent=47 // pred_check_branch
          %1182 = sbr.rel (%p1180) target = $region52
        $region51: #{tpu_custom_call.1} parent=47 // pred_region
          %s1183 = sand.u32 %s110, 1
          %s1184 = scalar_lea.sflag [#allocation5], %s1183
          %s1185 = sand.u32 %s110, 1
          %s1186 = smul.addr %s1185, 4
          %s1187 = scalar_lea.vmem [#allocation8], %s1186
          %1188 = dma.done %s1184, 64
        $region52: #{tpu_custom_call.1} parent=47 // pred_fallthru
          _
      $region48: #{tpu_custom_call.1} parent=5 // pred_fallthru
        _
    $region6: #{tpu_custom_call.1} parent=1 // loop_footer
      %s21 = sadd.s32 1, %s17
    $region7: #{tpu_custom_call.1} parent=1 // loop_footer_branch
      %16 = sbr.rel target = $region3
    $region8: #{tpu_custom_call.1} parent=1 // loop_exit
      _
    %1189 = vsyncpa [#allocation4], 1
    %s1190 = scalar_lea.sflag [#allocation4], 1
    %1191 = vsyncpa %s1190, 1
    %1192 = vsyncpa [#allocation7], 1
    %s1193 = scalar_lea.sflag [#allocation7], 1
    %1194 = vsyncpa %s1193, 1
    %1195 = vsyncpa [#allocation5], 1
    %s1196 = scalar_lea.sflag [#allocation5], 1
    %1197 = vsyncpa %s1196, 1

</llo_original>
